<compile_context>
chip_gen: v5e
topology: v5e:2x2
jax: 0.10.0
libtpu: 0.0.40
codegen_flags: <defaults>
</compile_context>

<pallas_src>
import math

import jax
import jax.numpy as jnp
from jax.experimental import pallas as pl
from jax.experimental.pallas import tpu as pltpu


def _self_attention_kernel(x_ref, w1_ref, b1_ref, w2r_ref, wc1_ref, bc1_ref,
                           wc2r_ref, bc2_ref, o_ref):
    # x_ref:  (Bt, T, F) VMEM block of the current batch tile
    # o_ref:  (1, 1, Bt)  lane-dense score vector for this batch tile
    bt, t, f = x_ref.shape
    x = x_ref[...]                                                   # (Bt, T, F)
    x2 = x.reshape(bt * t, f)                                        # (Bt*T, F)

    # --- net_att: Linear -> tanh ---
    h = jnp.tanh(
        jnp.dot(x2, w1_ref[...], preferred_element_type=jnp.float32)
        + b1_ref[...])                                               # (Bt*T, A)
    h3 = h.reshape(bt, t, -1)                                        # (Bt, T, A)

    # Second attention Linear has N == 1: do it as VPU multiply + lane reduce.
    # b2 is omitted: it is constant along T, so the T-axis softmax is invariant to it.
    logits = jnp.sum(h3 * w2r_ref[...], axis=-1)                     # (Bt, T)

    # --- softmax over T (per sample) ---
    m = jnp.max(logits, axis=1, keepdims=True)                       # (Bt, 1)
    e = jnp.exp(logits - m)                                          # (Bt, T)
    att = e / jnp.sum(e, axis=1, keepdims=True)                      # (Bt, T)
    # nn.Dropout is identity at inference time (eval mode).

    # --- attention pooling; PyTorch uses att[:, :, 0] for every head ---
    pooled = jnp.sum(x * att[:, :, None], axis=1)                    # (Bt, F)

    # --- net_cls: Linear -> Linear -> sigmoid ---
    c = (jnp.dot(pooled, wc1_ref[...], preferred_element_type=jnp.float32)
         + bc1_ref[...])                                             # (Bt, C)
    logit = jnp.sum(c * wc2r_ref[...], axis=-1) + bc2_ref[0]         # (Bt,)
    o_ref[...] = (1.0 / (1.0 + jnp.exp(-logit))).reshape(1, 1, bt)


def _pick_block_b(b, t, f, att_dim, budget_bytes=20 * 1024 * 1024):
    """Largest batch tile <= 128 whose per-step VMEM working set fits the budget
    (budget chosen to be safe on v7x's 64 MiB VMEM / 32 MiB scoped default)."""
    bt = min(b, 128)

    def est(bb):
        x_bytes = 2 * bb * t * f * 4          # double-buffered x block
        h_bytes = bb * t * att_dim * 4        # tanh activation
        misc = 4 * bb * (t + f) * 4           # logits / att / pooled / temporaries
        return x_bytes + h_bytes + misc

    while bt > 1 and est(bt) > budget_bytes:
        bt //= 2
    return max(bt, 1)


def self_attention_forward(x, params, block_b=None):
    """x: (B, T, F) float32. Returns (B,) float32 scores."""
    b, t, f = x.shape
    w1, b1, w2, b2, wc1, bc1, wc2, bc2 = params
    att_dim = w1.shape[1]
    cls_dim = wc1.shape[1]
    del b2  # constant along the softmax (T) axis -> no effect on the output

    if block_b is None:
        block_b = _pick_block_b(b, t, f, att_dim)
    num_blocks = pl.cdiv(b, block_b)
    b_pad = num_blocks * block_b
    if b_pad != b:
        x = jnp.pad(x, ((0, b_pad - b), (0, 0), (0, 0)))

    # Lane-friendly row-vector forms of the two N==1 weight columns.
    w2_row = w2[:, 0].reshape(1, att_dim)       # only column 0 feeds the output
    wc2_row = wc2[:, 0].reshape(1, cls_dim)
    bc2_s = bc2.reshape(1)                      # scalar bias -> SMEM

    const2d = lambda i: (0, 0)

    out = pl.pallas_call(
        _self_attention_kernel,
        out_shape=jax.ShapeDtypeStruct((num_blocks, 1, block_b), jnp.float32),
        grid=(num_blocks,),
        in_specs=[
            pl.BlockSpec((block_b, t, f), lambda i: (i, 0, 0)),   # x, one batch tile per step
            pl.BlockSpec((f, att_dim), const2d),                  # W1
            pl.BlockSpec((1, att_dim), const2d),                  # b1
            pl.BlockSpec((1, att_dim), const2d),                  # W2[:,0] row
            pl.BlockSpec((f, cls_dim), const2d),                  # Wc1
            pl.BlockSpec((1, cls_dim), const2d),                  # bc1
            pl.BlockSpec((1, cls_dim), const2d),                  # Wc2[:,0] row
            pl.BlockSpec(memory_space=pltpu.MemorySpace.SMEM),    # bc2 scalar
        ],
        out_specs=pl.BlockSpec((1, 1, block_b), lambda i: (i, 0, 0)),
        compiler_params=pltpu.CompilerParams(
            dimension_semantics=("parallel",)),
    )(x, w1, b1, w2_row, wc1, bc1, wc2_row, bc2_s)
    return out.reshape(b_pad)[:b]


def self_attention_ref(x, params):
    """Pure-JAX reference of the PyTorch forward (eval mode, r == 1)."""
    w1, b1, w2, b2, wc1, bc1, wc2, bc2 = params
    h = jnp.tanh(x @ w1 + b1)                                   # (B, T, A)
    logits = h @ w2 + b2                                        # (B, T, R)
    att = jax.nn.softmax(logits, axis=1)                        # softmax over T
    pooled = jnp.sum(x * att[:, :, 0:1], axis=1)                # (B, F)
    c = pooled @ wc1 + bc1
    out = jax.nn.sigmoid(c @ wc2 + bc2)                         # (B, 1)
    return out.reshape(x.shape[0])


if __name__ == "__main__":
    key = jax.random.PRNGKey(0)
    batch, seq, dfeat = 2, 8, 32
    att_dim, r, cls_dim = 128, 1, 64

    ks = jax.random.split(key, 9)
    x = jax.random.normal(ks[0], (batch, seq, dfeat), dtype=jnp.float32)

    def lin(k, fan_in, fan_out):
        s = 1.0 / math.sqrt(fan_in)
        return jax.random.uniform(k, (fan_in, fan_out), jnp.float32, -s, s)

    w1 = lin(ks[1], dfeat, att_dim)
    b1 = jax.random.uniform(ks[2], (1, att_dim), jnp.float32, -0.1, 0.1)
    w2 = lin(ks[3], att_dim, r)
    b2 = jax.random.uniform(ks[4], (1, r), jnp.float32, -0.1, 0.1)
    wc1 = lin(ks[5], dfeat, cls_dim)
    bc1 = jax.random.uniform(ks[6], (1, cls_dim), jnp.float32, -0.1, 0.1)
    wc2 = lin(ks[7], cls_dim, 1)
    bc2 = jax.random.uniform(ks[8], (1, 1), jnp.float32, -0.1, 0.1)

    params = (w1, b1, w2, b2, wc1, bc1, wc2, bc2)

    # TODO(synk): nn.Dropout(0.3) is stochastic only in training; inference identity is used here.
    out = self_attention_forward(x, params)
    out = jax.block_until_ready(out)

    ref = self_attention_ref(x, params)
    assert out.shape == (batch,)
    assert out.dtype == jnp.float32
    assert jnp.allclose(out, ref, atol=1e-5, rtol=1e-4), (out, ref)

    print("KERNEL_OK")
</pallas_src>

<mosaic_0001>
module attributes {stable_mosaic.version = 11 : i64} {
  func.func @_self_attention_kernel(%arg0: i32, %arg1: memref<2x8x32xf32, #tpu.memory_space<vmem>>, %arg2: memref<32x128xf32, #tpu.memory_space<vmem>>, %arg3: memref<1x128xf32, #tpu.memory_space<vmem>>, %arg4: memref<1x128xf32, #tpu.memory_space<vmem>>, %arg5: memref<32x64xf32, #tpu.memory_space<vmem>>, %arg6: memref<1x64xf32, #tpu.memory_space<vmem>>, %arg7: memref<1x64xf32, #tpu.memory_space<vmem>>, %arg8: memref<1xf32, #tpu.memory_space<smem>>, %arg9: memref<1x1x2xf32, #tpu.memory_space<vmem>>) attributes {dimension_semantics = [#tpu.dimension_semantics<parallel>], iteration_bounds = array<i64: 1>, scalar_prefetch = 0 : i64, scratch_operands = 0 : i64, tpu.core_type = #tpu.core_type<tc>, window_params = [{transform_indices = @transform_0, window_bounds = array<i64: 2, 8, 32>}, {pipeline_mode = #tpu.pipeline_mode<synchronous>, transform_indices = @transform_1, window_bounds = array<i64: 32, 128>}, {pipeline_mode = #tpu.pipeline_mode<synchronous>, transform_indices = @transform_2, window_bounds = array<i64: 1, 128>}, {pipeline_mode = #tpu.pipeline_mode<synchronous>, transform_indices = @transform_3, window_bounds = array<i64: 1, 128>}, {pipeline_mode = #tpu.pipeline_mode<synchronous>, transform_indices = @transform_4, window_bounds = array<i64: 32, 64>}, {pipeline_mode = #tpu.pipeline_mode<synchronous>, transform_indices = @transform_5, window_bounds = array<i64: 1, 64>}, {pipeline_mode = #tpu.pipeline_mode<synchronous>, transform_indices = @transform_6, window_bounds = array<i64: 1, 64>}, {transform_indices = @transform_7, window_bounds = array<i64: 1>}, {transform_indices = @transform_8, window_bounds = array<i64: 1, 1, 2>}]} {
    %c0 = arith.constant 0 : index
    %c0_0 = arith.constant 0 : index
    %c0_1 = arith.constant 0 : index
    %0 = vector.load %arg1[%c0, %c0_0, %c0_1] : memref<2x8x32xf32, #tpu.memory_space<vmem>>, vector<2x8x32xf32>
    %1 = vector.shape_cast %0 : vector<2x8x32xf32> to vector<16x32xf32>
    %c0_2 = arith.constant 0 : index
    %c0_3 = arith.constant 0 : index
    %2 = vector.load %arg2[%c0_2, %c0_3] : memref<32x128xf32, #tpu.memory_space<vmem>>, vector<32x128xf32>
    %cst = arith.constant dense<0.000000e+00> : vector<16x128xf32>
    %3 = tpu.matmul %1, %2, %cst {dimension_numbers = #tpu.dot_dimension_numbers<[1], [0], [0], [1], [0, 0, 1, 1], [], []>} : vector<16x32xf32>, vector<32x128xf32>, vector<16x128xf32> -> vector<16x128xf32>
    %c0_4 = arith.constant 0 : index
    %c0_5 = arith.constant 0 : index
    %4 = vector.load %arg3[%c0_4, %c0_5] : memref<1x128xf32, #tpu.memory_space<vmem>>, vector<1x128xf32>
    %5 = vector.broadcast %4 : vector<1x128xf32> to vector<16x128xf32>
    %6 = arith.addf %3, %5 : vector<16x128xf32>
    %7 = math.tanh %6 : vector<16x128xf32>
    %8 = vector.shape_cast %7 : vector<16x128xf32> to vector<2x8x128xf32>
    %c0_6 = arith.constant 0 : index
    %c0_7 = arith.constant 0 : index
    %9 = vector.load %arg4[%c0_6, %c0_7] : memref<1x128xf32, #tpu.memory_space<vmem>>, vector<1x128xf32>
    %10 = vector.shape_cast %9 : vector<1x128xf32> to vector<1x1x128xf32>
    %11 = vector.broadcast %10 : vector<1x1x128xf32> to vector<2x8x128xf32>
    %12 = arith.mulf %8, %11 : vector<2x8x128xf32>
    %cst_8 = arith.constant dense<0.000000e+00> : vector<2x8xf32>
    %13 = vector.multi_reduction <add>, %12, %cst_8 [2] : vector<2x8x128xf32> to vector<2x8xf32>
    %cst_9 = arith.constant dense<0xFF800000> : vector<2xf32>
    %14 = vector.multi_reduction <maximumf>, %13, %cst_9 [1] : vector<2x8xf32> to vector<2xf32>
    %15 = vector.shape_cast %14 : vector<2xf32> to vector<2x1xf32>
    %16 = vector.broadcast %15 : vector<2x1xf32> to vector<2x8xf32>
    %17 = arith.subf %13, %16 : vector<2x8xf32>
    %18 = math.exp %17 : vector<2x8xf32>
    %cst_10 = arith.constant dense<0.000000e+00> : vector<2xf32>
    %19 = vector.multi_reduction <add>, %18, %cst_10 [1] : vector<2x8xf32> to vector<2xf32>
    %20 = vector.shape_cast %19 : vector<2xf32> to vector<2x1xf32>
    %21 = vector.broadcast %20 : vector<2x1xf32> to vector<2x8xf32>
    %22 = arith.divf %18, %21 : vector<2x8xf32>
    %23 = vector.shape_cast %22 : vector<2x8xf32> to vector<2x8x1xf32>
    %24 = vector.broadcast %23 : vector<2x8x1xf32> to vector<2x8x32xf32>
    %25 = arith.mulf %0, %24 : vector<2x8x32xf32>
    %cst_11 = arith.constant dense<0.000000e+00> : vector<2x32xf32>
    %26 = vector.multi_reduction <add>, %25, %cst_11 [1] : vector<2x8x32xf32> to vector<2x32xf32>
    %c0_12 = arith.constant 0 : index
    %c0_13 = arith.constant 0 : index
    %27 = vector.load %arg5[%c0_12, %c0_13] : memref<32x64xf32, #tpu.memory_space<vmem>>, vector<32x64xf32>
    %cst_14 = arith.constant dense<0.000000e+00> : vector<2x64xf32>
    %28 = tpu.matmul %26, %27, %cst_14 {dimension_numbers = #tpu.dot_dimension_numbers<[1], [0], [0], [1], [0, 0, 1, 1], [], []>} : vector<2x32xf32>, vector<32x64xf32>, vector<2x64xf32> -> vector<2x64xf32>
    %c0_15 = arith.constant 0 : index
    %c0_16 = arith.constant 0 : index
    %29 = vector.load %arg6[%c0_15, %c0_16] : memref<1x64xf32, #tpu.memory_space<vmem>>, vector<1x64xf32>
    %30 = vector.broadcast %29 : vector<1x64xf32> to vector<2x64xf32>
    %31 = arith.addf %28, %30 : vector<2x64xf32>
    %c0_17 = arith.constant 0 : index
    %c0_18 = arith.constant 0 : index
    %32 = vector.load %arg7[%c0_17, %c0_18] : memref<1x64xf32, #tpu.memory_space<vmem>>, vector<1x64xf32>
    %33 = vector.broadcast %32 : vector<1x64xf32> to vector<2x64xf32>
    %34 = arith.mulf %31, %33 : vector<2x64xf32>
    %cst_19 = arith.constant dense<0.000000e+00> : vector<2xf32>
    %35 = vector.multi_reduction <add>, %34, %cst_19 [1] : vector<2x64xf32> to vector<2xf32>
    %c0_20 = arith.constant 0 : index
    %36 = memref.load %arg8[%c0_20] : memref<1xf32, #tpu.memory_space<smem>>
    %37 = vector.broadcast %36 : f32 to vector<2xf32>
    %38 = arith.addf %35, %37 : vector<2xf32>
    %cst_21 = arith.constant 0.000000e+00 : f32
    %39 = vector.broadcast %cst_21 : f32 to vector<2xf32>
    %40 = arith.subf %39, %38 : vector<2xf32>
    %41 = math.exp %40 : vector<2xf32>
    %cst_22 = arith.constant 1.000000e+00 : f32
    %42 = vector.broadcast %cst_22 : f32 to vector<2xf32>
    %43 = arith.addf %42, %41 : vector<2xf32>
    %cst_23 = arith.constant 1.000000e+00 : f32
    %44 = vector.broadcast %cst_23 : f32 to vector<2xf32>
    %45 = arith.divf %44, %43 : vector<2xf32>
    %46 = vector.shape_cast %45 : vector<2xf32> to vector<1x1x2xf32>
    %c0_24 = arith.constant 0 : index
    %c0_25 = arith.constant 0 : index
    %c0_26 = arith.constant 0 : index
    %47 = vector.load %arg9[%c0_24, %c0_25, %c0_26] : memref<1x1x2xf32, #tpu.memory_space<vmem>>, vector<1x1x2xf32>
    tpu.vector_store %arg9[%c0_24, %c0_25, %c0_26], %46 {strides = array<i32>} : memref<1x1x2xf32, #tpu.memory_space<vmem>>, vector<1x1x2xf32>,
    return
  }
  func.func @transform_0(%arg0: i32) -> (i32, i32, i32) {
    %c0_i32 = arith.constant 0 : i32
    %c0_i32_0 = arith.constant 0 : i32
    %c0_i32_1 = arith.constant 0 : i32
    return %arg0, %c0_i32, %c0_i32_0 : i32, i32, i32
  }
  func.func @transform_1(%arg0: i32) -> (i32, i32) {
    %c0_i32 = arith.constant 0 : i32
    %c0_i32_0 = arith.constant 0 : i32
    %c0_i32_1 = arith.constant 0 : i32
    return %c0_i32, %c0_i32_0 : i32, i32
  }
  func.func @transform_2(%arg0: i32) -> (i32, i32) {
    %c0_i32 = arith.constant 0 : i32
    %c0_i32_0 = arith.constant 0 : i32
    %c0_i32_1 = arith.constant 0 : i32
    return %c0_i32, %c0_i32_0 : i32, i32
  }
  func.func @transform_3(%arg0: i32) -> (i32, i32) {
    %c0_i32 = arith.constant 0 : i32
    %c0_i32_0 = arith.constant 0 : i32
    %c0_i32_1 = arith.constant 0 : i32
    return %c0_i32, %c0_i32_0 : i32, i32
  }
  func.func @transform_4(%arg0: i32) -> (i32, i32) {
    %c0_i32 = arith.constant 0 : i32
    %c0_i32_0 = arith.constant 0 : i32
    %c0_i32_1 = arith.constant 0 : i32
    return %c0_i32, %c0_i32_0 : i32, i32
  }
  func.func @transform_5(%arg0: i32) -> (i32, i32) {
    %c0_i32 = arith.constant 0 : i32
    %c0_i32_0 = arith.constant 0 : i32
    %c0_i32_1 = arith.constant 0 : i32
    return %c0_i32, %c0_i32_0 : i32, i32
  }
  func.func @transform_6(%arg0: i32) -> (i32, i32) {
    %c0_i32 = arith.constant 0 : i32
    %c0_i32_0 = arith.constant 0 : i32
    %c0_i32_1 = arith.constant 0 : i32
    return %c0_i32, %c0_i32_0 : i32, i32
  }
  func.func @transform_7(%arg0: i32) -> i32 {
    %c0_i32 = arith.constant 0 : i32
    %c0_i32_0 = arith.constant 0 : i32
    return %c0_i32 : i32
  }
  func.func @transform_8(%arg0: i32) -> (i32, i32, i32) {
    %c0_i32 = arith.constant 0 : i32
    %c0_i32_0 = arith.constant 0 : i32
    %c0_i32_1 = arith.constant 0 : i32
    return %arg0, %c0_i32, %c0_i32_0 : i32, i32, i32
  }
}

</mosaic_0001>

<llo_original>
// kernel: tpu_custom_call.1
$region0: #{tpu_custom_call.1}
  #allocation0 [shape = 'u32[]', space=smem, size = 0x4, offset = 0x4, fixed_abs, tag = 'smem constant byte address 0x4 - core index']
  #allocation1 [shape = 'u32[72,128]{1,0:T(1,128)}', space=vmem, size = 0x9000, scoped, tag = 'internal scratch']
  #allocation2 [shape = 'f32[1]{0:T(128)S(6)}', space=smem, size = 0x200, scoped, tag = 'scoped memory for tpu_custom_call.1']
  %s0 = inlined_call_operand.hbm [shape: f32[2,8,32], index: 0, kind: input, shape index: {}]
  %s1 = inlined_call_operand.hbm [shape: f32[32,128], index: 1, kind: input, shape index: {}]
  %s2 = inlined_call_operand.vmem [shape: f32[1,128], index: 2, kind: input, shape index: {}]
  %s3 = inlined_call_operand.vmem [shape: f32[1,128], index: 3, kind: input, shape index: {}]
  %s4 = inlined_call_operand.hbm [shape: f32[32,64], index: 4, kind: input, shape index: {}]
  %s5 = inlined_call_operand.vmem [shape: f32[1,64], index: 5, kind: input, shape index: {}]
  %s6 = inlined_call_operand.vmem [shape: f32[1,64], index: 6, kind: input, shape index: {}]
  %s7 = inlined_call_operand.<no memory space> [shape: f32[1], index: 7, kind: input, shape index: {}]
  %s8 = inlined_call_operand.hbm [shape: f32[1,1,2], index: 8, kind: output, shape index: {}]
  %s9 = sld [smem:[#allocation0]]
  $region54: #{tpu_custom_call.1} parent=0
    _
  %s11 = ssub.s32 1, %s9
  %s12 = scalar_select 0, %s11, %s9
  %13 = sst [smem:[#allocation2]] %s7
  $region1: #{tpu_custom_call.1} parent=0
    #allocation3 [shape = 'u8[8192]{0}', space=vmem, size = 0x2000, scoped, tag = 'input window, operand 0, single buffered']
    #allocation4 [shape = 's32[1]{0}', space=sflag, size = 0x4, scoped, tag = 'scoped memory for tpu_custom_call.1']
    #allocation5 [shape = 's32[1]{0}', space=sflag, size = 0x4, scoped, tag = 'scoped memory for tpu_custom_call.1']
    #allocation6 [shape = 'u8[16384]{0}', space=vmem, size = 0x4000, scoped, tag = 'input window, operand 1, single buffered']
    #allocation7 [shape = 's32[1]{0}', space=sflag, size = 0x4, scoped, tag = 'scoped memory for tpu_custom_call.1']
    #allocation8 [shape = 'u8[16384]{0}', space=vmem, size = 0x4000, scoped, tag = 'input window, operand 4, single buffered']
    #allocation9 [shape = 'u8[512]{0}', space=vmem, size = 0x400, scoped, tag = 'output window, operand 0, single buffered']
    %14 = vsyncpa [#allocation4], 0
    %15 = vsyncpa [#allocation7], 0
    %16 = vsyncpa [#allocation5], 0
    // Predicated region
    $region2: #{tpu_custom_call.1} parent=1 // pred_check
      _
    $region3: #{tpu_custom_call.1} parent=1 // pred_check_branch
      %18 = sbr.rel (0) target = $region5
    $region4: #{tpu_custom_call.1} parent=1 // pred_region
      %20 = vsyncadd [#allocation4], 0
      %s21 = sshll.u32 %s0, 4
      %s22 = int_to_ptr.hbm [resolvable:$true] %s21
      %s23 = sshll.u32 [#allocation3], 4
      %s24 = int_to_ptr.vmem [resolvable:$true] %s23
      %29 = dma.hbm_to_vmem [thread:$0]  %s22, 256, %s24, [#allocation4], 128, 128, 8
    $region5: #{tpu_custom_call.1} parent=1 // pred_fallthru
      _
    // Predicated region
    $region6: #{tpu_custom_call.1} parent=1 // pred_check
      _
    $region7: #{tpu_custom_call.1} parent=1 // pred_check_branch
      %31 = sbr.rel (0) target = $region9
    $region8: #{tpu_custom_call.1} parent=1 // pred_region
      %33 = vsyncadd [#allocation7], 0
      %s34 = sshll.u32 %s1, 4
      %s35 = int_to_ptr.hbm [resolvable:$true] %s34
      %s36 = sshll.u32 [#allocation6], 4
      %s37 = int_to_ptr.vmem [resolvable:$true] %s36
      %42 = dma.hbm_to_vmem [thread:$0]  %s35, 512, %s37, [#allocation7], 128, 128, 8
    $region9: #{tpu_custom_call.1} parent=1 // pred_fallthru
      _
    // Predicated region
    $region10: #{tpu_custom_call.1} parent=1 // pred_check
      _
    $region11: #{tpu_custom_call.1} parent=1 // pred_check_branch
      %44 = sbr.rel (0) target = $region13
    $region12: #{tpu_custom_call.1} parent=1 // pred_region
      _
    $region13: #{tpu_custom_call.1} parent=1 // pred_fallthru
      _
    // Predicated region
    $region14: #{tpu_custom_call.1} parent=1 // pred_check
      _
    $region15: #{tpu_custom_call.1} parent=1 // pred_check_branch
      %46 = sbr.rel (0) target = $region17
    $region16: #{tpu_custom_call.1} parent=1 // pred_region
      _
    $region17: #{tpu_custom_call.1} parent=1 // pred_fallthru
      _
    // Predicated region
    $region18: #{tpu_custom_call.1} parent=1 // pred_check
      _
    $region19: #{tpu_custom_call.1} parent=1 // pred_check_branch
      %48 = sbr.rel (0) target = $region21
    $region20: #{tpu_custom_call.1} parent=1 // pred_region
      %50 = vsyncadd [#allocation7], 0
      %s51 = sshll.u32 %s4, 4
      %s52 = int_to_ptr.hbm [resolvable:$true] %s51
      %s53 = sshll.u32 [#allocation8], 4
      %s54 = int_to_ptr.vmem [resolvable:$true] %s53
      %59 = dma.hbm_to_vmem [thread:$0]  %s52, 512, %s54, [#allocation7], 128, 128, 8
    $region21: #{tpu_custom_call.1} parent=1 // pred_fallthru
      _
    // Predicated region
    $region22: #{tpu_custom_call.1} parent=1 // pred_check
      _
    $region23: #{tpu_custom_call.1} parent=1 // pred_check_branch
      %61 = sbr.rel (0) target = $region25
    $region24: #{tpu_custom_call.1} parent=1 // pred_region
      _
    $region25: #{tpu_custom_call.1} parent=1 // pred_fallthru
      _
    // Predicated region
    $region26: #{tpu_custom_call.1} parent=1 // pred_check
      _
    $region27: #{tpu_custom_call.1} parent=1 // pred_check_branch
      %63 = sbr.rel (0) target = $region29
    $region28: #{tpu_custom_call.1} parent=1 // pred_region
      _
    $region29: #{tpu_custom_call.1} parent=1 // pred_fallthru
      _
    // Predicated region
    $region30: #{tpu_custom_call.1} parent=1 // pred_check
      _
    $region31: #{tpu_custom_call.1} parent=1 // pred_check_branch
      %65 = sbr.rel (0) target = $region33
    $region32: #{tpu_custom_call.1} parent=1 // pred_region
      _
    $region33: #{tpu_custom_call.1} parent=1 // pred_fallthru
      _
    // Predicated region
    $region34: #{tpu_custom_call.1} parent=1 // pred_check
      _
    $region35: #{tpu_custom_call.1} parent=1 // pred_check_branch
      %67 = sbr.rel (0) target = $region37
    $region36: #{tpu_custom_call.1} parent=1 // pred_region
      %69 = dma.done [#allocation4], 256
    $region37: #{tpu_custom_call.1} parent=1 // pred_fallthru
      _
    // Predicated region
    $region38: #{tpu_custom_call.1} parent=1 // pred_check
      _
    $region39: #{tpu_custom_call.1} parent=1 // pred_check_branch
      %71 = sbr.rel (0) target = $region41
    $region40: #{tpu_custom_call.1} parent=1 // pred_region
      %73 = dma.done [#allocation7], 512
    $region41: #{tpu_custom_call.1} parent=1 // pred_fallthru
      _
    // Predicated region
    $region42: #{tpu_custom_call.1} parent=1 // pred_check
      _
    $region43: #{tpu_custom_call.1} parent=1 // pred_check_branch
      %75 = sbr.rel (0) target = $region45
    $region44: #{tpu_custom_call.1} parent=1 // pred_region
      %77 = dma.done [#allocation7], 512
    $region45: #{tpu_custom_call.1} parent=1 // pred_fallthru
      _
    %v78 = vld [vmem:[#allocation3] sm:$0xff]
    %v79 = vld [vmem:[#allocation3 + $0x8] sm:$0xff]
    %v80 = vld [vmem:[#allocation6] sm:$0xff]
    %v81 = vld [vmem:[#allocation6 + $0x8] sm:$0xff]
    %v82 = vld [vmem:[#allocation6 + $0x10] sm:$0xff]
    %v83 = vld [vmem:[#allocation6 + $0x18] sm:$0xff]
    %v84 = vld [vmem:[%s2] sm:$0x1]
    %v86 = vperm.slane %v84, 0
    %vm88 = vcmask 261120
    %v90 = vsel %vm88, %v78, 0
    %v93 = vsel %vm88, %v79, 0
    %95 = vmatpush.msra.mxu0 0.0
    %96 = vmatpush.msra.mxu0 0.0
    %97 = vmatpush.msra.mxu0 0.0
    %98 = vmatpush.msra.mxu0 0.0
    %99 = vmatpush.msra.mxu0 0.0
    %100 = vmatpush.msra.mxu0 0.0
    %101 = vmatpush.msra.mxu0 0.0
    %102 = vmatpush.msra.mxu0 0.0
    %103 = vmatpush.msra.mxu0 0.0
    %104 = vmatpush.msra.mxu0 0.0
    %105 = vmatpush.msra.mxu0 0.0
    %106 = vmatpush.msra.mxu0 0.0
    %107 = vmatpush.msra.mxu0 %v83
    %108 = vmatpush.msra.mxu0 %v82
    %109 = vmatpush.msra.mxu0 %v81
    %110 = vmatpush.msra.mxu0 %v80
    %111 = vmatmul.f32.gmra.mxu0 %v90
    %v112 = vpop.f32.mrf.mxu0
    %v113 = vadd.f32 %v86, %v112
    %114 = vmatmul.f32.gmra.mxu0 %v93
    %v115 = vpop.f32.mrf.mxu0
    %v116 = vadd.f32 %v86, %v115
    %117 = vdwg.mxu0
    %v118 = vtanh.pop %v113
    %v119 = vtanh.pop %v116
    %v120 = vld [vmem:[%s3] sm:$0x1]
    %v122 = vperm.slane %v120, 0
    %v124 = vmul.f32 %v118, %v122
    %v125 = vmul.f32 %v119, %v122
    %126 = vadd.xlane.f32.xlu0 %v124
    %v127 = vpop.xlane.xlu0 %126
    %128 = vadd.xlane.f32.xlu0 %v125
    %v129 = vpop.xlane.xlu0 %128
    %v132 = vlaneseq
    %v133 = vand.u32 %v132, 127
    %v134 = vperm.slane %v127, %v133
    %v135 = vperm.slane %v129, %v133
    %vm136 = vcmask 1041409
    %v137 = vsel %vm136, %v135, %v134
    %vm139 = vcmask 58368
    %v140 = vsel %vm139, %v137, -inf
    %141 = vmax.xlane.f32.xlu0 %v140
    %v142 = vpop.xlane.xlu0 %141
    %v144 = vperm.slane %v142, 0
    %v145 = vperm.slane %v142, 1
    %v148 = vsub.f32 %v127, %v144
    %v149 = vsub.f32 %v129, %v145
    %v150 = vmul.f32 %v148, 1.442695
    %v151 = vpow.pop %v150
    %v152 = vmul.f32 %v149, 1.442695
    %v153 = vpow.pop %v152
    %156 = vset.pattern.permute.xlu0 0
    %157 = vperm.xlu0 %156, %v151
    %v158 = vpop.permute.xlu0 %157
    %159 = vset.pattern.permute.xlu0 0
    %160 = vperm.xlu0 %159, %v153
    %v161 = vpop.permute.xlu0 %160
    %v162 = vperm.slane %v158, %v133
    %v163 = vperm.slane %v161, %v133
    %v164 = vsel %vm136, %v163, %v162
    %v166 = vsel %vm139, %v164, 0.0
    %167 = vadd.xlane.f32.xlu0 %v166
    %v168 = vpop.xlane.xlu0 %167
    %v170 = vperm.slane %v168, 0
    %v171 = vperm.slane %v168, 1
    %v174 = vrcp.pop %v170
    %v175 = vmul.f32 %v170, %v174
    %v176 = vsub.f32 1.0, %v175
    %v177 = vmul.f32 %v174, %v176
    %v178 = vadd.f32 %v174, %v177
    %vm179 = vweird.f32 %v170
    %vm180 = vweird.f32 %v174
    %vm181 = vmor %vm179, %vm180
    %v182 = vsel %vm181, %v174, %v178
    %v183 = vand.u32 2147483647, %v170
    %vm184 = vcmp.eq.f32.partialorder %v183, 8.507059e+37
    %v185 = vand.u32 %v170, 2147483648
    %v186 = vor.u32 1.1754944e-38, %v185
    %v187 = vsel %vm184, %v186, %v182
    %v188 = vmul.f32 %v151, %v187
    %v189 = vrcp.pop %v171
    %v190 = vmul.f32 %v171, %v189
    %v191 = vsub.f32 1.0, %v190
    %v192 = vmul.f32 %v189, %v191
    %v193 = vadd.f32 %v189, %v192
    %vm194 = vweird.f32 %v171
    %vm195 = vweird.f32 %v189
    %vm196 = vmor %vm194, %vm195
    %v197 = vsel %vm196, %v189, %v193
    %v198 = vand.u32 2147483647, %v171
    %vm199 = vcmp.eq.f32.partialorder %v198, 8.507059e+37
    %v200 = vand.u32 %v171, 2147483648
    %v201 = vor.u32 1.1754944e-38, %v200
    %v202 = vsel %vm199, %v201, %v197
    %v203 = vmul.f32 %v153, %v202
    %205 = vset.pattern.permute.xlu0 0
    %206 = vperm.xlu0 %205, %v188
    %v207 = vpop.permute.xlu0 %206
    %210 = vset.pattern.permute.xlu0 0
    %211 = vperm.xlu0 %210, %v203
    %v212 = vpop.permute.xlu0 %211
    %v214 = vmul.f32 %v78, %v207
    %v215 = vmul.f32 %v79, %v212
    %v216 = vsel %vm88, %v214, 0.0
    %v217 = vrot.slane %v216, 4
    %v218 = vadd.f32 %v216, %v217
    %v219 = vrot.slane %v218, 2
    %v220 = vadd.f32 %v218, %v219
    %v221 = vrot.slane %v220, 1
    %v222 = vadd.f32 %v220, %v221
    %v223 = vsel %vm88, %v215, 0.0
    %v224 = vrot.slane %v223, 4
    %v225 = vadd.f32 %v223, %v224
    %v226 = vrot.slane %v225, 2
    %v227 = vadd.f32 %v225, %v226
    %v228 = vrot.slane %v227, 1
    %v229 = vadd.f32 %v227, %v228
    %v230 = vld [vmem:[#allocation8] sm:$0xff]
    %v231 = vld [vmem:[#allocation8 + $0x8] sm:$0xff]
    %v232 = vld [vmem:[#allocation8 + $0x10] sm:$0xff]
    %v233 = vld [vmem:[#allocation8 + $0x18] sm:$0xff]
    %v234 = vld [vmem:[%s5] sm:$0x1]
    %v236 = vperm.slane %v234, 0
    %v240 = vsel %vm136, %v229, %v222
    %v241 = vsel %vm88, %v240, 0
    %243 = vmatpush.msra.mxu0 0.0
    %244 = vmatpush.msra.mxu0 0.0
    %245 = vmatpush.msra.mxu0 0.0
    %246 = vmatpush.msra.mxu0 0.0
    %247 = vmatpush.msra.mxu0 0.0
    %248 = vmatpush.msra.mxu0 0.0
    %249 = vmatpush.msra.mxu0 0.0
    %250 = vmatpush.msra.mxu0 0.0
    %251 = vmatpush.msra.mxu0 0.0
    %252 = vmatpush.msra.mxu0 0.0
    %253 = vmatpush.msra.mxu0 0.0
    %254 = vmatpush.msra.mxu0 0.0
    %255 = vmatpush.msra.mxu0 %v233
    %256 = vmatpush.msra.mxu0 %v232
    %257 = vmatpush.msra.mxu0 %v231
    %258 = vmatpush.msra.mxu0 %v230
    %259 = vmatmul.f32.gmra.mxu0 %v241
    %v260 = vpop.f32.mrf.mxu0
    %v261 = vadd.f32 %v236, %v260
    %262 = vdwg.mxu0
    %v263 = vld [vmem:[%s6] sm:$0x1]
    %v265 = vperm.slane %v263, 0
    %v267 = vmul.f32 %v261, %v265
    %vm268 = vcmask 517120
    %v269 = vsel %vm268, %v267, 0.0
    %270 = vadd.xlane.f32.xlu0 %v269
    %v271 = vpop.xlane.xlu0 %270
    %s272 = sld [smem:[#allocation2]]
    %v273 = vstv %s272
    %v274 = vadd.f32 %v271, %v273
    %v275 = vsub.f32 0.0, %v274
    %v276 = vmul.f32 %v275, 1.442695
    %v277 = vpow.pop %v276
    %v278 = vadd.f32 %v277, 1.0
    %v279 = vrcp.pop %v278
    %v280 = vmul.f32 %v278, %v279
    %v281 = vsub.f32 1.0, %v280
    %v282 = vmul.f32 %v279, %v281
    %v283 = vadd.f32 %v279, %v282
    %vm284 = vweird.f32 %v278
    %vm285 = vweird.f32 %v279
    %vm286 = vmor %vm284, %vm285
    %v287 = vsel %vm286, %v279, %v283
    %v288 = vand.u32 2147483647, %v278
    %vm289 = vcmp.eq.f32.partialorder %v288, 8.507059e+37
    %v290 = vand.u32 %v278, 2147483648
    %v291 = vor.u32 1.1754944e-38, %v290
    %v292 = vsel %vm289, %v291, %v287
    %v293 = vmul.f32 1.0, %v292
    %v295 = vperm.slane %v293, %v133
    %vm297 = vcmask 8192
    %298 = vst.msk [vmem:[#allocation9] sm:$0x1] %vm297, %v295
    // Predicated region
    $region46: #{tpu_custom_call.1} parent=1 // pred_check
      _
    $region47: #{tpu_custom_call.1} parent=1 // pred_check_branch
      %300 = sbr.rel (0) target = $region49
    $region48: #{tpu_custom_call.1} parent=1 // pred_region
      %302 = vsyncadd [#allocation5], 0
      %s304 = sshll.u32 [#allocation9], 4
      %s305 = int_to_ptr.vmem [resolvable:$true] %s304
      %s306 = sshll.u32 %s8, 4
      %s307 = int_to_ptr.hbm [resolvable:$true] %s306
      %309 = dma.vmem_to_hbm [thread:$0]  %s305, 16, %s307, [#allocation5]
    $region49: #{tpu_custom_call.1} parent=1 // pred_fallthru
      _
    // Predicated region
    $region50: #{tpu_custom_call.1} parent=1 // pred_check
      _
    $region51: #{tpu_custom_call.1} parent=1 // pred_check_branch
      %311 = sbr.rel (0) target = $region53
    $region52: #{tpu_custom_call.1} parent=1 // pred_region
      %313 = dma.done [#allocation5], 16
    $region53: #{tpu_custom_call.1} parent=1 // pred_fallthru
      _
    %314 = vsyncpa [#allocation4], 1
    %315 = vsyncpa [#allocation7], 1
    %316 = vsyncpa [#allocation5], 1

</llo_original>
